<compile_context>
chip_gen: v5e
topology: v5e:2x2
jax: 0.10.0
libtpu: 0.0.40
codegen_flags: <defaults>
</compile_context>

<pallas_src>
import functools

import jax
import jax.numpy as jnp
from jax.experimental import pallas as pl
from jax.experimental.pallas import tpu as pltpu

NUM_STAB_CONST = 0.0001


def _band_matrix(size, pad, dtype=jnp.float32):
    """(size, size) ones-band matrix: 1 where |i - j| <= pad, else 0."""
    idx = jnp.arange(size)
    return (jnp.abs(idx[:, None] - idx[None, :]) <= pad).astype(dtype)


def _pick_batch_tile(n, H, W, max_tile=8, budget_bytes=8 * 1024 * 1024):
    """Largest divisor of n (<= max_tile) whose in-kernel f32 footprint fits."""
    per_image = H * W * 4 * 16  # ~16x raw f32 image bytes live per image in-kernel
    cap = max(1, min(max_tile, budget_bytes // max(per_image, 1)))
    for t in range(min(n, cap), 0, -1):
        if n % t == 0:
            return t
    return 1


def _make_ncc_kernel(B, H, W, windows_size):
    inv_wv = 1.0 / float(windows_size ** 2)  # dim == 2

    def kernel(a_h_ref, a_w_ref, i_ref, j_ref, o_ref):
        A_H = a_h_ref[...]  # (H, H) f32
        A_W = a_w_ref[...]  # (W, W) f32

        def window_sum(x):  # (H, W) -> (H, W); separable box filter on the MXU
            v = jnp.dot(A_H, x, preferred_element_type=jnp.float32)
            return jnp.dot(v, A_W, preferred_element_type=jnp.float32)

        acc = jnp.zeros((1, W), jnp.float32)  # per-lane partial sums
        for b in range(B):                    # static unroll over the batch tile
            Ib = i_ref[b].astype(jnp.float32)  # (H, W)
            Jb = j_ref[b].astype(jnp.float32)

            I_sum = window_sum(Ib)
            J_sum = window_sum(Jb)
            I2_sum = window_sum(Ib * Ib)
            J2_sum = window_sum(Jb * Jb)
            IJ_sum = window_sum(Ib * Jb)

            cross = jnp.maximum(IJ_sum - I_sum * J_sum * inv_wv, NUM_STAB_CONST)
            I_var = jnp.maximum(I2_sum - I_sum * I_sum * inv_wv, NUM_STAB_CONST)
            J_var = jnp.maximum(J2_sum - J_sum * J_sum * inv_wv, NUM_STAB_CONST)
            cc = cross * jax.lax.rsqrt(I_var * J_var)  # rsqrt -> EUP slot

            # reduce over H only (sublane direction); lanes reduced in wrapper
            acc = acc + jnp.sum(cc, axis=0, keepdims=True)

        o_ref[0] = acc  # single lane-dense (1, W) store per grid step

    return kernel


@functools.partial(jax.jit, static_argnames=("windows_size",))
def ncc_pallas(I, J, windows_size=11):
    """Pallas implementation of NCC.forward (dim=2). Returns a scalar."""
    n, c, H, W = I.shape
    assert c == 1 and J.shape == I.shape
    pad = windows_size // 2

    # keep original dtype for the HBM->VMEM DMA; cast to f32 inside the kernel
    Isq = I.reshape(n, H, W)
    Jsq = J.reshape(n, H, W)

    a_h = _band_matrix(H, pad)
    a_w = _band_matrix(W, pad)

    b_tile = _pick_batch_tile(n, H, W)
    num_blocks = n // b_tile

    kernel = _make_ncc_kernel(b_tile, H, W, windows_size)
    partials = pl.pallas_call(
        kernel,
        out_shape=jax.ShapeDtypeStruct((num_blocks, 1, W), jnp.float32),
        grid_spec=pltpu.PrefetchScalarGridSpec(
            num_scalar_prefetch=0,
            grid=(num_blocks,),
            in_specs=[
                pl.BlockSpec((H, H), lambda g: (0, 0)),          # A_H
                pl.BlockSpec((W, W), lambda g: (0, 0)),          # A_W
                pl.BlockSpec((b_tile, H, W), lambda g: (g, 0, 0)),  # I tile
                pl.BlockSpec((b_tile, H, W), lambda g: (g, 0, 0)),  # J tile
            ],
            out_specs=pl.BlockSpec((1, 1, W), lambda g: (g, 0, 0)),
        ),
        compiler_params=pltpu.CompilerParams(
            # each step writes its own output block -> no cross-step state, so
            # the batch axis can be sharded across TensorCores (2x on v7x).
            dimension_semantics=("parallel",)),
    )(a_h, a_w, Isq, Jsq)

    total_elems = n * 1 * H * W
    return -(jnp.sum(partials) / total_elems)


def ncc_reference(I, J, windows_size=11):
    """Pure-JAX reference (mirrors the PyTorch module) for correctness check."""
    pad = windows_size // 2
    wv = float(windows_size ** 2)
    filt = jnp.ones((1, 1, windows_size, windows_size), jnp.float32)

    def conv(x):
        return jax.lax.conv_general_dilated(
            x.astype(jnp.float32), filt, window_strides=(1, 1),
            padding=[(pad, pad), (pad, pad)],
            dimension_numbers=("NCHW", "OIHW", "NCHW"))

    I_sum, J_sum = conv(I), conv(J)
    I2_sum, J2_sum, IJ_sum = conv(I * I), conv(J * J), conv(I * J)
    cross = jnp.maximum(IJ_sum - I_sum * J_sum / wv, NUM_STAB_CONST)
    I_var = jnp.maximum(I2_sum - I_sum ** 2 / wv, NUM_STAB_CONST)
    J_var = jnp.maximum(J2_sum - J_sum ** 2 / wv, NUM_STAB_CONST)
    cc = cross / jnp.sqrt(I_var * J_var)
    return -jnp.mean(cc)


if __name__ == "__main__":
    key = jax.random.PRNGKey(0)
    k1, k2 = jax.random.split(key)
    n, c, H, W = 2, 1, 16, 16
    I = jax.random.uniform(k1, (n, c, H, W), dtype=jnp.float32)
    J = jax.random.uniform(k2, (n, c, H, W), dtype=jnp.float32)

    out = jax.block_until_ready(ncc_pallas(I, J, windows_size=11))
    ref = jax.block_until_ready(ncc_reference(I, J, windows_size=11))
    assert jnp.allclose(out, ref, rtol=1e-3, atol=1e-5), (out, ref)

    print("KERNEL_OK")
</pallas_src>

<mosaic_0001>
module attributes {stable_mosaic.version = 11 : i64} {
  func.func @kernel(%arg0: i32, %arg1: memref<16x16xf32, #tpu.memory_space<vmem>>, %arg2: memref<16x16xf32, #tpu.memory_space<vmem>>, %arg3: memref<2x16x16xf32, #tpu.memory_space<vmem>>, %arg4: memref<2x16x16xf32, #tpu.memory_space<vmem>>, %arg5: memref<1x1x16xf32, #tpu.memory_space<vmem>>) attributes {dimension_semantics = [#tpu.dimension_semantics<parallel>], iteration_bounds = array<i64: 1>, scalar_prefetch = 0 : i64, scratch_operands = 0 : i64, tpu.core_type = #tpu.core_type<tc>, window_params = [{pipeline_mode = #tpu.pipeline_mode<synchronous>, transform_indices = @transform_0, window_bounds = array<i64: 16, 16>}, {pipeline_mode = #tpu.pipeline_mode<synchronous>, transform_indices = @transform_1, window_bounds = array<i64: 16, 16>}, {transform_indices = @transform_2, window_bounds = array<i64: 2, 16, 16>}, {transform_indices = @transform_3, window_bounds = array<i64: 2, 16, 16>}, {transform_indices = @transform_4, window_bounds = array<i64: 1, 1, 16>}]} {
    %c0 = arith.constant 0 : index
    %c0_0 = arith.constant 0 : index
    %0 = vector.load %arg1[%c0, %c0_0] : memref<16x16xf32, #tpu.memory_space<vmem>>, vector<16x16xf32>
    %c0_1 = arith.constant 0 : index
    %c0_2 = arith.constant 0 : index
    %1 = vector.load %arg2[%c0_1, %c0_2] : memref<16x16xf32, #tpu.memory_space<vmem>>, vector<16x16xf32>
    %cst = arith.constant 0.000000e+00 : f32
    %2 = vector.broadcast %cst : f32 to vector<1x16xf32>
    %c0_3 = arith.constant 0 : index
    %c0_4 = arith.constant 0 : index
    %c0_5 = arith.constant 0 : index
    %3 = vector.load %arg3[%c0_3, %c0_4, %c0_5] : memref<2x16x16xf32, #tpu.memory_space<vmem>>, vector<1x16x16xf32>
    %4 = vector.shape_cast %3 : vector<1x16x16xf32> to vector<16x16xf32>
    %c0_6 = arith.constant 0 : index
    %c0_7 = arith.constant 0 : index
    %c0_8 = arith.constant 0 : index
    %5 = vector.load %arg4[%c0_6, %c0_7, %c0_8] : memref<2x16x16xf32, #tpu.memory_space<vmem>>, vector<1x16x16xf32>
    %6 = vector.shape_cast %5 : vector<1x16x16xf32> to vector<16x16xf32>
    %cst_9 = arith.constant dense<0.000000e+00> : vector<16x16xf32>
    %7 = tpu.matmul %0, %4, %cst_9 {dimension_numbers = #tpu.dot_dimension_numbers<[1], [0], [0], [1], [0, 0, 1, 1], [], []>} : vector<16x16xf32>, vector<16x16xf32>, vector<16x16xf32> -> vector<16x16xf32>
    %cst_10 = arith.constant dense<0.000000e+00> : vector<16x16xf32>
    %8 = tpu.matmul %7, %1, %cst_10 {dimension_numbers = #tpu.dot_dimension_numbers<[1], [0], [0], [1], [0, 0, 1, 1], [], []>} : vector<16x16xf32>, vector<16x16xf32>, vector<16x16xf32> -> vector<16x16xf32>
    %cst_11 = arith.constant dense<0.000000e+00> : vector<16x16xf32>
    %9 = tpu.matmul %0, %6, %cst_11 {dimension_numbers = #tpu.dot_dimension_numbers<[1], [0], [0], [1], [0, 0, 1, 1], [], []>} : vector<16x16xf32>, vector<16x16xf32>, vector<16x16xf32> -> vector<16x16xf32>
    %cst_12 = arith.constant dense<0.000000e+00> : vector<16x16xf32>
    %10 = tpu.matmul %9, %1, %cst_12 {dimension_numbers = #tpu.dot_dimension_numbers<[1], [0], [0], [1], [0, 0, 1, 1], [], []>} : vector<16x16xf32>, vector<16x16xf32>, vector<16x16xf32> -> vector<16x16xf32>
    %11 = arith.mulf %4, %4 : vector<16x16xf32>
    %cst_13 = arith.constant dense<0.000000e+00> : vector<16x16xf32>
    %12 = tpu.matmul %0, %11, %cst_13 {dimension_numbers = #tpu.dot_dimension_numbers<[1], [0], [0], [1], [0, 0, 1, 1], [], []>} : vector<16x16xf32>, vector<16x16xf32>, vector<16x16xf32> -> vector<16x16xf32>
    %cst_14 = arith.constant dense<0.000000e+00> : vector<16x16xf32>
    %13 = tpu.matmul %12, %1, %cst_14 {dimension_numbers = #tpu.dot_dimension_numbers<[1], [0], [0], [1], [0, 0, 1, 1], [], []>} : vector<16x16xf32>, vector<16x16xf32>, vector<16x16xf32> -> vector<16x16xf32>
    %14 = arith.mulf %6, %6 : vector<16x16xf32>
    %cst_15 = arith.constant dense<0.000000e+00> : vector<16x16xf32>
    %15 = tpu.matmul %0, %14, %cst_15 {dimension_numbers = #tpu.dot_dimension_numbers<[1], [0], [0], [1], [0, 0, 1, 1], [], []>} : vector<16x16xf32>, vector<16x16xf32>, vector<16x16xf32> -> vector<16x16xf32>
    %cst_16 = arith.constant dense<0.000000e+00> : vector<16x16xf32>
    %16 = tpu.matmul %15, %1, %cst_16 {dimension_numbers = #tpu.dot_dimension_numbers<[1], [0], [0], [1], [0, 0, 1, 1], [], []>} : vector<16x16xf32>, vector<16x16xf32>, vector<16x16xf32> -> vector<16x16xf32>
    %17 = arith.mulf %4, %6 : vector<16x16xf32>
    %cst_17 = arith.constant dense<0.000000e+00> : vector<16x16xf32>
    %18 = tpu.matmul %0, %17, %cst_17 {dimension_numbers = #tpu.dot_dimension_numbers<[1], [0], [0], [1], [0, 0, 1, 1], [], []>} : vector<16x16xf32>, vector<16x16xf32>, vector<16x16xf32> -> vector<16x16xf32>
    %cst_18 = arith.constant dense<0.000000e+00> : vector<16x16xf32>
    %19 = tpu.matmul %18, %1, %cst_18 {dimension_numbers = #tpu.dot_dimension_numbers<[1], [0], [0], [1], [0, 0, 1, 1], [], []>} : vector<16x16xf32>, vector<16x16xf32>, vector<16x16xf32> -> vector<16x16xf32>
    %20 = arith.mulf %8, %10 : vector<16x16xf32>
    %cst_19 = arith.constant 0.00826446246 : f32
    %21 = vector.broadcast %cst_19 : f32 to vector<16x16xf32>
    %22 = arith.mulf %20, %21 : vector<16x16xf32>
    %23 = arith.subf %19, %22 : vector<16x16xf32>
    %cst_20 = arith.constant 9.99999974E-5 : f32
    %24 = vector.broadcast %cst_20 : f32 to vector<16x16xf32>
    %25 = arith.maximumf %23, %24 : vector<16x16xf32>
    %26 = arith.mulf %8, %8 : vector<16x16xf32>
    %cst_21 = arith.constant 0.00826446246 : f32
    %27 = vector.broadcast %cst_21 : f32 to vector<16x16xf32>
    %28 = arith.mulf %26, %27 : vector<16x16xf32>
    %29 = arith.subf %13, %28 : vector<16x16xf32>
    %cst_22 = arith.constant 9.99999974E-5 : f32
    %30 = vector.broadcast %cst_22 : f32 to vector<16x16xf32>
    %31 = arith.maximumf %29, %30 : vector<16x16xf32>
    %32 = arith.mulf %10, %10 : vector<16x16xf32>
    %cst_23 = arith.constant 0.00826446246 : f32
    %33 = vector.broadcast %cst_23 : f32 to vector<16x16xf32>
    %34 = arith.mulf %32, %33 : vector<16x16xf32>
    %35 = arith.subf %16, %34 : vector<16x16xf32>
    %cst_24 = arith.constant 9.99999974E-5 : f32
    %36 = vector.broadcast %cst_24 : f32 to vector<16x16xf32>
    %37 = arith.maximumf %35, %36 : vector<16x16xf32>
    %38 = arith.mulf %31, %37 : vector<16x16xf32>
    %39 = math.rsqrt %38 : vector<16x16xf32>
    %40 = arith.mulf %25, %39 : vector<16x16xf32>
    %cst_25 = arith.constant dense<0.000000e+00> : vector<16xf32>
    %41 = vector.multi_reduction <add>, %40, %cst_25 [0] : vector<16x16xf32> to vector<16xf32>
    %42 = vector.shape_cast %41 : vector<16xf32> to vector<1x16xf32>
    %43 = arith.addf %2, %42 : vector<1x16xf32>
    %c1 = arith.constant 1 : index
    %c0_26 = arith.constant 0 : index
    %c0_27 = arith.constant 0 : index
    %44 = vector.load %arg3[%c1, %c0_26, %c0_27] : memref<2x16x16xf32, #tpu.memory_space<vmem>>, vector<1x16x16xf32>
    %45 = vector.shape_cast %44 : vector<1x16x16xf32> to vector<16x16xf32>
    %c1_28 = arith.constant 1 : index
    %c0_29 = arith.constant 0 : index
    %c0_30 = arith.constant 0 : index
    %46 = vector.load %arg4[%c1_28, %c0_29, %c0_30] : memref<2x16x16xf32, #tpu.memory_space<vmem>>, vector<1x16x16xf32>
    %47 = vector.shape_cast %46 : vector<1x16x16xf32> to vector<16x16xf32>
    %cst_31 = arith.constant dense<0.000000e+00> : vector<16x16xf32>
    %48 = tpu.matmul %0, %45, %cst_31 {dimension_numbers = #tpu.dot_dimension_numbers<[1], [0], [0], [1], [0, 0, 1, 1], [], []>} : vector<16x16xf32>, vector<16x16xf32>, vector<16x16xf32> -> vector<16x16xf32>
    %cst_32 = arith.constant dense<0.000000e+00> : vector<16x16xf32>
    %49 = tpu.matmul %48, %1, %cst_32 {dimension_numbers = #tpu.dot_dimension_numbers<[1], [0], [0], [1], [0, 0, 1, 1], [], []>} : vector<16x16xf32>, vector<16x16xf32>, vector<16x16xf32> -> vector<16x16xf32>
    %cst_33 = arith.constant dense<0.000000e+00> : vector<16x16xf32>
    %50 = tpu.matmul %0, %47, %cst_33 {dimension_numbers = #tpu.dot_dimension_numbers<[1], [0], [0], [1], [0, 0, 1, 1], [], []>} : vector<16x16xf32>, vector<16x16xf32>, vector<16x16xf32> -> vector<16x16xf32>
    %cst_34 = arith.constant dense<0.000000e+00> : vector<16x16xf32>
    %51 = tpu.matmul %50, %1, %cst_34 {dimension_numbers = #tpu.dot_dimension_numbers<[1], [0], [0], [1], [0, 0, 1, 1], [], []>} : vector<16x16xf32>, vector<16x16xf32>, vector<16x16xf32> -> vector<16x16xf32>
    %52 = arith.mulf %45, %45 : vector<16x16xf32>
    %cst_35 = arith.constant dense<0.000000e+00> : vector<16x16xf32>
    %53 = tpu.matmul %0, %52, %cst_35 {dimension_numbers = #tpu.dot_dimension_numbers<[1], [0], [0], [1], [0, 0, 1, 1], [], []>} : vector<16x16xf32>, vector<16x16xf32>, vector<16x16xf32> -> vector<16x16xf32>
    %cst_36 = arith.constant dense<0.000000e+00> : vector<16x16xf32>
    %54 = tpu.matmul %53, %1, %cst_36 {dimension_numbers = #tpu.dot_dimension_numbers<[1], [0], [0], [1], [0, 0, 1, 1], [], []>} : vector<16x16xf32>, vector<16x16xf32>, vector<16x16xf32> -> vector<16x16xf32>
    %55 = arith.mulf %47, %47 : vector<16x16xf32>
    %cst_37 = arith.constant dense<0.000000e+00> : vector<16x16xf32>
    %56 = tpu.matmul %0, %55, %cst_37 {dimension_numbers = #tpu.dot_dimension_numbers<[1], [0], [0], [1], [0, 0, 1, 1], [], []>} : vector<16x16xf32>, vector<16x16xf32>, vector<16x16xf32> -> vector<16x16xf32>
    %cst_38 = arith.constant dense<0.000000e+00> : vector<16x16xf32>
    %57 = tpu.matmul %56, %1, %cst_38 {dimension_numbers = #tpu.dot_dimension_numbers<[1], [0], [0], [1], [0, 0, 1, 1], [], []>} : vector<16x16xf32>, vector<16x16xf32>, vector<16x16xf32> -> vector<16x16xf32>
    %58 = arith.mulf %45, %47 : vector<16x16xf32>
    %cst_39 = arith.constant dense<0.000000e+00> : vector<16x16xf32>
    %59 = tpu.matmul %0, %58, %cst_39 {dimension_numbers = #tpu.dot_dimension_numbers<[1], [0], [0], [1], [0, 0, 1, 1], [], []>} : vector<16x16xf32>, vector<16x16xf32>, vector<16x16xf32> -> vector<16x16xf32>
    %cst_40 = arith.constant dense<0.000000e+00> : vector<16x16xf32>
    %60 = tpu.matmul %59, %1, %cst_40 {dimension_numbers = #tpu.dot_dimension_numbers<[1], [0], [0], [1], [0, 0, 1, 1], [], []>} : vector<16x16xf32>, vector<16x16xf32>, vector<16x16xf32> -> vector<16x16xf32>
    %61 = arith.mulf %49, %51 : vector<16x16xf32>
    %cst_41 = arith.constant 0.00826446246 : f32
    %62 = vector.broadcast %cst_41 : f32 to vector<16x16xf32>
    %63 = arith.mulf %61, %62 : vector<16x16xf32>
    %64 = arith.subf %60, %63 : vector<16x16xf32>
    %cst_42 = arith.constant 9.99999974E-5 : f32
    %65 = vector.broadcast %cst_42 : f32 to vector<16x16xf32>
    %66 = arith.maximumf %64, %65 : vector<16x16xf32>
    %67 = arith.mulf %49, %49 : vector<16x16xf32>
    %cst_43 = arith.constant 0.00826446246 : f32
    %68 = vector.broadcast %cst_43 : f32 to vector<16x16xf32>
    %69 = arith.mulf %67, %68 : vector<16x16xf32>
    %70 = arith.subf %54, %69 : vector<16x16xf32>
    %cst_44 = arith.constant 9.99999974E-5 : f32
    %71 = vector.broadcast %cst_44 : f32 to vector<16x16xf32>
    %72 = arith.maximumf %70, %71 : vector<16x16xf32>
    %73 = arith.mulf %51, %51 : vector<16x16xf32>
    %cst_45 = arith.constant 0.00826446246 : f32
    %74 = vector.broadcast %cst_45 : f32 to vector<16x16xf32>
    %75 = arith.mulf %73, %74 : vector<16x16xf32>
    %76 = arith.subf %57, %75 : vector<16x16xf32>
    %cst_46 = arith.constant 9.99999974E-5 : f32
    %77 = vector.broadcast %cst_46 : f32 to vector<16x16xf32>
    %78 = arith.maximumf %76, %77 : vector<16x16xf32>
    %79 = arith.mulf %72, %78 : vector<16x16xf32>
    %80 = math.rsqrt %79 : vector<16x16xf32>
    %81 = arith.mulf %66, %80 : vector<16x16xf32>
    %cst_47 = arith.constant dense<0.000000e+00> : vector<16xf32>
    %82 = vector.multi_reduction <add>, %81, %cst_47 [0] : vector<16x16xf32> to vector<16xf32>
    %83 = vector.shape_cast %82 : vector<16xf32> to vector<1x16xf32>
    %84 = arith.addf %43, %83 : vector<1x16xf32>
    %c0_48 = arith.constant 0 : index
    %c0_49 = arith.constant 0 : index
    %c0_50 = arith.constant 0 : index
    %85 = vector.load %arg5[%c0_48, %c0_49, %c0_50] : memref<1x1x16xf32, #tpu.memory_space<vmem>>, vector<1x1x16xf32>
    %86 = vector.shape_cast %85 : vector<1x1x16xf32> to vector<1x16xf32>
    %87 = vector.shape_cast %84 : vector<1x16xf32> to vector<1x1x16xf32>
    tpu.vector_store %arg5[%c0_48, %c0_49, %c0_50], %87 {strides = array<i32>} : memref<1x1x16xf32, #tpu.memory_space<vmem>>, vector<1x1x16xf32>,
    return
  }
  func.func @transform_0(%arg0: i32) -> (i32, i32) {
    %c0_i32 = arith.constant 0 : i32
    %c0_i32_0 = arith.constant 0 : i32
    %c0_i32_1 = arith.constant 0 : i32
    return %c0_i32, %c0_i32_0 : i32, i32
  }
  func.func @transform_1(%arg0: i32) -> (i32, i32) {
    %c0_i32 = arith.constant 0 : i32
    %c0_i32_0 = arith.constant 0 : i32
    %c0_i32_1 = arith.constant 0 : i32
    return %c0_i32, %c0_i32_0 : i32, i32
  }
  func.func @transform_2(%arg0: i32) -> (i32, i32, i32) {
    %c0_i32 = arith.constant 0 : i32
    %c0_i32_0 = arith.constant 0 : i32
    %c0_i32_1 = arith.constant 0 : i32
    return %arg0, %c0_i32, %c0_i32_0 : i32, i32, i32
  }
  func.func @transform_3(%arg0: i32) -> (i32, i32, i32) {
    %c0_i32 = arith.constant 0 : i32
    %c0_i32_0 = arith.constant 0 : i32
    %c0_i32_1 = arith.constant 0 : i32
    return %arg0, %c0_i32, %c0_i32_0 : i32, i32, i32
  }
  func.func @transform_4(%arg0: i32) -> (i32, i32, i32) {
    %c0_i32 = arith.constant 0 : i32
    %c0_i32_0 = arith.constant 0 : i32
    %c0_i32_1 = arith.constant 0 : i32
    return %arg0, %c0_i32, %c0_i32_0 : i32, i32, i32
  }
}

</mosaic_0001>

<llo_original>
// kernel: ncc_pallas.1
$region0: #{ncc_pallas.1}
  #allocation0 [shape = 'u32[]', space=smem, size = 0x4, offset = 0x4, fixed_abs, tag = 'smem constant byte address 0x4 - core index']
  #allocation1 [shape = 'u32[72,128]{1,0:T(1,128)}', space=vmem, size = 0x9000, scoped, tag = 'internal scratch']
  %s0 = inlined_call_operand.vmem [shape: f32[16,16], index: 0, kind: input, shape index: {}, may-alias: {0,1}]
  %s1 = inlined_call_operand.vmem [shape: f32[16,16], index: 1, kind: input, shape index: {}, may-alias: {0,1}]
  %s2 = inlined_call_operand.hbm [shape: f32[2,16,16], index: 2, kind: input, shape index: {}]
  %s3 = inlined_call_operand.hbm [shape: f32[2,16,16], index: 3, kind: input, shape index: {}]
  %s4 = inlined_call_operand.vmem [shape: f32[1,1,16], index: 4, kind: output, shape index: {}]
  %s5 = sld [smem:[#allocation0]]
  $region34: #{ncc_pallas.1} parent=0
    _
  %s7 = ssub.s32 1, %s5
  %s8 = scalar_select 0, %s7, %s5
  $region1: #{ncc_pallas.1} parent=0
    #allocation2 [shape = 'u8[16384]{0}', space=vmem, size = 0x4000, scoped, tag = 'input window, operand 2, single buffered']
    #allocation3 [shape = 's32[1]{0}', space=sflag, size = 0x4, scoped, tag = 'scoped memory for ncc_pallas.1']
    #allocation4 [shape = 'u8[16384]{0}', space=vmem, size = 0x4000, scoped, tag = 'input window, operand 3, single buffered']
    #allocation5 [shape = 's32[1]{0}', space=sflag, size = 0x4, scoped, tag = 'scoped memory for ncc_pallas.1']
    %9 = vsyncpa [#allocation3], 0
    %10 = vsyncpa [#allocation5], 0
    // Predicated region
    $region2: #{ncc_pallas.1} parent=1 // pred_check
      _
    $region3: #{ncc_pallas.1} parent=1 // pred_check_branch
      %12 = sbr.rel (0) target = $region5
    $region4: #{ncc_pallas.1} parent=1 // pred_region
      _
    $region5: #{ncc_pallas.1} parent=1 // pred_fallthru
      _
    // Predicated region
    $region6: #{ncc_pallas.1} parent=1 // pred_check
      _
    $region7: #{ncc_pallas.1} parent=1 // pred_check_branch
      %14 = sbr.rel (0) target = $region9
    $region8: #{ncc_pallas.1} parent=1 // pred_region
      _
    $region9: #{ncc_pallas.1} parent=1 // pred_fallthru
      _
    // Predicated region
    $region10: #{ncc_pallas.1} parent=1 // pred_check
      _
    $region11: #{ncc_pallas.1} parent=1 // pred_check_branch
      %16 = sbr.rel (0) target = $region13
    $region12: #{ncc_pallas.1} parent=1 // pred_region
      %18 = vsyncadd [#allocation3], 0
      %s19 = sshll.u32 %s2, 4
      %s20 = int_to_ptr.hbm [resolvable:$true] %s19
      %s21 = sshll.u32 [#allocation2], 4
      %s22 = int_to_ptr.vmem [resolvable:$true] %s21
      %27 = dma.hbm_to_vmem [thread:$0]  %s20, 512, %s22, [#allocation3], 128, 128, 8
    $region13: #{ncc_pallas.1} parent=1 // pred_fallthru
      _
    // Predicated region
    $region14: #{ncc_pallas.1} parent=1 // pred_check
      _
    $region15: #{ncc_pallas.1} parent=1 // pred_check_branch
      %29 = sbr.rel (0) target = $region17
    $region16: #{ncc_pallas.1} parent=1 // pred_region
      %31 = vsyncadd [#allocation5], 0
      %s32 = sshll.u32 %s3, 4
      %s33 = int_to_ptr.hbm [resolvable:$true] %s32
      %s34 = sshll.u32 [#allocation4], 4
      %s35 = int_to_ptr.vmem [resolvable:$true] %s34
      %40 = dma.hbm_to_vmem [thread:$0]  %s33, 512, %s35, [#allocation5], 128, 128, 8
    $region17: #{ncc_pallas.1} parent=1 // pred_fallthru
      _
    // Predicated region
    $region18: #{ncc_pallas.1} parent=1 // pred_check
      _
    $region19: #{ncc_pallas.1} parent=1 // pred_check_branch
      %42 = sbr.rel (0) target = $region21
    $region20: #{ncc_pallas.1} parent=1 // pred_region
      %44 = dma.done [#allocation3], 512
    $region21: #{ncc_pallas.1} parent=1 // pred_fallthru
      _
    // Predicated region
    $region22: #{ncc_pallas.1} parent=1 // pred_check
      _
    $region23: #{ncc_pallas.1} parent=1 // pred_check_branch
      %46 = sbr.rel (0) target = $region25
    $region24: #{ncc_pallas.1} parent=1 // pred_region
      %48 = dma.done [#allocation5], 512
    $region25: #{ncc_pallas.1} parent=1 // pred_fallthru
      _
    %v49 = vld [vmem:[%s0] sm:$0xff]
    %v50 = vld [vmem:[%s0 + $0x8] sm:$0xff]
    %v51 = vld [vmem:[%s1] sm:$0xff]
    %v52 = vld [vmem:[%s1 + $0x8] sm:$0xff]
    %v53 = vld [vmem:[#allocation2] sm:$0xff]
    %v54 = vld [vmem:[#allocation2 + $0x8] sm:$0xff]
    %v55 = vld [vmem:[#allocation4] sm:$0xff]
    %v56 = vld [vmem:[#allocation4 + $0x8] sm:$0xff]
    %vm57 = vcmask 130048
    %v59 = vsel %vm57, %v49, 0
    %v62 = vsel %vm57, %v50, 0
    %64 = vmatpush.msra.mxu0 0.0
    %65 = vmatpush.msra.mxu0 0.0
    %66 = vmatpush.msra.mxu0 0.0
    %67 = vmatpush.msra.mxu0 0.0
    %68 = vmatpush.msra.mxu0 0.0
    %69 = vmatpush.msra.mxu0 0.0
    %70 = vmatpush.msra.mxu0 0.0
    %71 = vmatpush.msra.mxu0 0.0
    %72 = vmatpush.msra.mxu0 0.0
    %73 = vmatpush.msra.mxu0 0.0
    %74 = vmatpush.msra.mxu0 0.0
    %75 = vmatpush.msra.mxu0 0.0
    %76 = vmatpush.msra.mxu0 0.0
    %77 = vmatpush.msra.mxu0 0.0
    %78 = vmatpush.msra.mxu0 %v54
    %79 = vmatpush.msra.mxu0 %v53
    %80 = vmatmul.f32.gmra.mxu0 %v59
    %v81 = vpop.f32.mrf.mxu0
    %v82 = vadd.f32 0.0, %v81
    %83 = vmatmul.f32.gmra.mxu0 %v62
    %v84 = vpop.f32.mrf.mxu0
    %v85 = vadd.f32 0.0, %v84
    %86 = vdwg.mxu0
    %v88 = vsel %vm57, %v82, 0
    %v91 = vsel %vm57, %v85, 0
    %93 = vmatpush.msra.mxu0 0.0
    %94 = vmatpush.msra.mxu0 0.0
    %95 = vmatpush.msra.mxu0 0.0
    %96 = vmatpush.msra.mxu0 0.0
    %97 = vmatpush.msra.mxu0 0.0
    %98 = vmatpush.msra.mxu0 0.0
    %99 = vmatpush.msra.mxu0 0.0
    %100 = vmatpush.msra.mxu0 0.0
    %101 = vmatpush.msra.mxu0 0.0
    %102 = vmatpush.msra.mxu0 0.0
    %103 = vmatpush.msra.mxu0 0.0
    %104 = vmatpush.msra.mxu0 0.0
    %105 = vmatpush.msra.mxu0 0.0
    %106 = vmatpush.msra.mxu0 0.0
    %107 = vmatpush.msra.mxu0 %v52
    %108 = vmatpush.msra.mxu0 %v51
    %109 = vmatmul.f32.gmra.mxu0 %v88
    %v110 = vpop.f32.mrf.mxu0
    %v111 = vadd.f32 0.0, %v110
    %112 = vmatmul.f32.gmra.mxu0 %v91
    %v113 = vpop.f32.mrf.mxu0
    %v114 = vadd.f32 0.0, %v113
    %115 = vdwg.mxu0
    %116 = vmatpush.msra.mxu0 0.0
    %117 = vmatpush.msra.mxu0 0.0
    %118 = vmatpush.msra.mxu0 0.0
    %119 = vmatpush.msra.mxu0 0.0
    %120 = vmatpush.msra.mxu0 0.0
    %121 = vmatpush.msra.mxu0 0.0
    %122 = vmatpush.msra.mxu0 0.0
    %123 = vmatpush.msra.mxu0 0.0
    %124 = vmatpush.msra.mxu0 0.0
    %125 = vmatpush.msra.mxu0 0.0
    %126 = vmatpush.msra.mxu0 0.0
    %127 = vmatpush.msra.mxu0 0.0
    %128 = vmatpush.msra.mxu0 0.0
    %129 = vmatpush.msra.mxu0 0.0
    %130 = vmatpush.msra.mxu0 %v56
    %131 = vmatpush.msra.mxu0 %v55
    %132 = vmatmul.f32.gmra.mxu0 %v59
    %v133 = vpop.f32.mrf.mxu0
    %v134 = vadd.f32 0.0, %v133
    %135 = vmatmul.f32.gmra.mxu0 %v62
    %v136 = vpop.f32.mrf.mxu0
    %v137 = vadd.f32 0.0, %v136
    %138 = vdwg.mxu0
    %v140 = vsel %vm57, %v134, 0
    %v143 = vsel %vm57, %v137, 0
    %145 = vmatpush.msra.mxu0 0.0
    %146 = vmatpush.msra.mxu0 0.0
    %147 = vmatpush.msra.mxu0 0.0
    %148 = vmatpush.msra.mxu0 0.0
    %149 = vmatpush.msra.mxu0 0.0
    %150 = vmatpush.msra.mxu0 0.0
    %151 = vmatpush.msra.mxu0 0.0
    %152 = vmatpush.msra.mxu0 0.0
    %153 = vmatpush.msra.mxu0 0.0
    %154 = vmatpush.msra.mxu0 0.0
    %155 = vmatpush.msra.mxu0 0.0
    %156 = vmatpush.msra.mxu0 0.0
    %157 = vmatpush.msra.mxu0 0.0
    %158 = vmatpush.msra.mxu0 0.0
    %159 = vmatpush.msra.mxu0 %v52
    %160 = vmatpush.msra.mxu0 %v51
    %161 = vmatmul.f32.gmra.mxu0 %v140
    %v162 = vpop.f32.mrf.mxu0
    %v163 = vadd.f32 0.0, %v162
    %164 = vmatmul.f32.gmra.mxu0 %v143
    %v165 = vpop.f32.mrf.mxu0
    %v166 = vadd.f32 0.0, %v165
    %167 = vdwg.mxu0
    %v168 = vmul.f32 %v53, %v53
    %v169 = vmul.f32 %v54, %v54
    %170 = vmatpush.msra.mxu0 0.0
    %171 = vmatpush.msra.mxu0 0.0
    %172 = vmatpush.msra.mxu0 0.0
    %173 = vmatpush.msra.mxu0 0.0
    %174 = vmatpush.msra.mxu0 0.0
    %175 = vmatpush.msra.mxu0 0.0
    %176 = vmatpush.msra.mxu0 0.0
    %177 = vmatpush.msra.mxu0 0.0
    %178 = vmatpush.msra.mxu0 0.0
    %179 = vmatpush.msra.mxu0 0.0
    %180 = vmatpush.msra.mxu0 0.0
    %181 = vmatpush.msra.mxu0 0.0
    %182 = vmatpush.msra.mxu0 0.0
    %183 = vmatpush.msra.mxu0 0.0
    %184 = vmatpush.msra.mxu0 %v169
    %185 = vmatpush.msra.mxu0 %v168
    %186 = vmatmul.f32.gmra.mxu0 %v59
    %v187 = vpop.f32.mrf.mxu0
    %v188 = vadd.f32 0.0, %v187
    %189 = vmatmul.f32.gmra.mxu0 %v62
    %v190 = vpop.f32.mrf.mxu0
    %v191 = vadd.f32 0.0, %v190
    %192 = vdwg.mxu0
    %v194 = vsel %vm57, %v188, 0
    %v197 = vsel %vm57, %v191, 0
    %199 = vmatpush.msra.mxu0 0.0
    %200 = vmatpush.msra.mxu0 0.0
    %201 = vmatpush.msra.mxu0 0.0
    %202 = vmatpush.msra.mxu0 0.0
    %203 = vmatpush.msra.mxu0 0.0
    %204 = vmatpush.msra.mxu0 0.0
    %205 = vmatpush.msra.mxu0 0.0
    %206 = vmatpush.msra.mxu0 0.0
    %207 = vmatpush.msra.mxu0 0.0
    %208 = vmatpush.msra.mxu0 0.0
    %209 = vmatpush.msra.mxu0 0.0
    %210 = vmatpush.msra.mxu0 0.0
    %211 = vmatpush.msra.mxu0 0.0
    %212 = vmatpush.msra.mxu0 0.0
    %213 = vmatpush.msra.mxu0 %v52
    %214 = vmatpush.msra.mxu0 %v51
    %215 = vmatmul.f32.gmra.mxu0 %v194
    %v216 = vpop.f32.mrf.mxu0
    %v217 = vadd.f32 0.0, %v216
    %218 = vmatmul.f32.gmra.mxu0 %v197
    %v219 = vpop.f32.mrf.mxu0
    %v220 = vadd.f32 0.0, %v219
    %221 = vdwg.mxu0
    %v222 = vmul.f32 %v55, %v55
    %v223 = vmul.f32 %v56, %v56
    %224 = vmatpush.msra.mxu0 0.0
    %225 = vmatpush.msra.mxu0 0.0
    %226 = vmatpush.msra.mxu0 0.0
    %227 = vmatpush.msra.mxu0 0.0
    %228 = vmatpush.msra.mxu0 0.0
    %229 = vmatpush.msra.mxu0 0.0
    %230 = vmatpush.msra.mxu0 0.0
    %231 = vmatpush.msra.mxu0 0.0
    %232 = vmatpush.msra.mxu0 0.0
    %233 = vmatpush.msra.mxu0 0.0
    %234 = vmatpush.msra.mxu0 0.0
    %235 = vmatpush.msra.mxu0 0.0
    %236 = vmatpush.msra.mxu0 0.0
    %237 = vmatpush.msra.mxu0 0.0
    %238 = vmatpush.msra.mxu0 %v223
    %239 = vmatpush.msra.mxu0 %v222
    %240 = vmatmul.f32.gmra.mxu0 %v59
    %v241 = vpop.f32.mrf.mxu0
    %v242 = vadd.f32 0.0, %v241
    %243 = vmatmul.f32.gmra.mxu0 %v62
    %v244 = vpop.f32.mrf.mxu0
    %v245 = vadd.f32 0.0, %v244
    %246 = vdwg.mxu0
    %v248 = vsel %vm57, %v242, 0
    %v251 = vsel %vm57, %v245, 0
    %253 = vmatpush.msra.mxu0 0.0
    %254 = vmatpush.msra.mxu0 0.0
    %255 = vmatpush.msra.mxu0 0.0
    %256 = vmatpush.msra.mxu0 0.0
    %257 = vmatpush.msra.mxu0 0.0
    %258 = vmatpush.msra.mxu0 0.0
    %259 = vmatpush.msra.mxu0 0.0
    %260 = vmatpush.msra.mxu0 0.0
    %261 = vmatpush.msra.mxu0 0.0
    %262 = vmatpush.msra.mxu0 0.0
    %263 = vmatpush.msra.mxu0 0.0
    %264 = vmatpush.msra.mxu0 0.0
    %265 = vmatpush.msra.mxu0 0.0
    %266 = vmatpush.msra.mxu0 0.0
    %267 = vmatpush.msra.mxu0 %v52
    %268 = vmatpush.msra.mxu0 %v51
    %269 = vmatmul.f32.gmra.mxu0 %v248
    %v270 = vpop.f32.mrf.mxu0
    %v271 = vadd.f32 0.0, %v270
    %272 = vmatmul.f32.gmra.mxu0 %v251
    %v273 = vpop.f32.mrf.mxu0
    %v274 = vadd.f32 0.0, %v273
    %275 = vdwg.mxu0
    %v276 = vmul.f32 %v53, %v55
    %v277 = vmul.f32 %v54, %v56
    %278 = vmatpush.msra.mxu0 0.0
    %279 = vmatpush.msra.mxu0 0.0
    %280 = vmatpush.msra.mxu0 0.0
    %281 = vmatpush.msra.mxu0 0.0
    %282 = vmatpush.msra.mxu0 0.0
    %283 = vmatpush.msra.mxu0 0.0
    %284 = vmatpush.msra.mxu0 0.0
    %285 = vmatpush.msra.mxu0 0.0
    %286 = vmatpush.msra.mxu0 0.0
    %287 = vmatpush.msra.mxu0 0.0
    %288 = vmatpush.msra.mxu0 0.0
    %289 = vmatpush.msra.mxu0 0.0
    %290 = vmatpush.msra.mxu0 0.0
    %291 = vmatpush.msra.mxu0 0.0
    %292 = vmatpush.msra.mxu0 %v277
    %293 = vmatpush.msra.mxu0 %v276
    %294 = vmatmul.f32.gmra.mxu0 %v59
    %v295 = vpop.f32.mrf.mxu0
    %v296 = vadd.f32 0.0, %v295
    %297 = vmatmul.f32.gmra.mxu0 %v62
    %v298 = vpop.f32.mrf.mxu0
    %v299 = vadd.f32 0.0, %v298
    %300 = vdwg.mxu0
    %v302 = vsel %vm57, %v296, 0
    %v305 = vsel %vm57, %v299, 0
    %307 = vmatpush.msra.mxu0 0.0
    %308 = vmatpush.msra.mxu0 0.0
    %309 = vmatpush.msra.mxu0 0.0
    %310 = vmatpush.msra.mxu0 0.0
    %311 = vmatpush.msra.mxu0 0.0
    %312 = vmatpush.msra.mxu0 0.0
    %313 = vmatpush.msra.mxu0 0.0
    %314 = vmatpush.msra.mxu0 0.0
    %315 = vmatpush.msra.mxu0 0.0
    %316 = vmatpush.msra.mxu0 0.0
    %317 = vmatpush.msra.mxu0 0.0
    %318 = vmatpush.msra.mxu0 0.0
    %319 = vmatpush.msra.mxu0 0.0
    %320 = vmatpush.msra.mxu0 0.0
    %321 = vmatpush.msra.mxu0 %v52
    %322 = vmatpush.msra.mxu0 %v51
    %323 = vmatmul.f32.gmra.mxu0 %v302
    %v324 = vpop.f32.mrf.mxu0
    %v325 = vadd.f32 0.0, %v324
    %326 = vmatmul.f32.gmra.mxu0 %v305
    %v327 = vpop.f32.mrf.mxu0
    %v328 = vadd.f32 0.0, %v327
    %329 = vdwg.mxu0
    %v330 = vmul.f32 %v111, %v163
    %v331 = vmul.f32 %v114, %v166
    %v332 = vmul.f32 %v330, 0.008264462
    %v333 = vmul.f32 %v331, 0.008264462
    %v334 = vsub.f32 %v325, %v332
    %v335 = vsub.f32 %v328, %v333
    %v336 = vmax.f32 %v334, 0.0001
    %v337 = vmax.f32 %v335, 0.0001
    %v338 = vmul.f32 %v111, %v111
    %v339 = vmul.f32 %v114, %v114
    %v340 = vmul.f32 %v338, 0.008264462
    %v341 = vmul.f32 %v339, 0.008264462
    %v342 = vsub.f32 %v217, %v340
    %v343 = vsub.f32 %v220, %v341
    %v344 = vmax.f32 %v342, 0.0001
    %v345 = vmax.f32 %v343, 0.0001
    %v346 = vmul.f32 %v163, %v163
    %v347 = vmul.f32 %v166, %v166
    %v348 = vmul.f32 %v346, 0.008264462
    %v349 = vmul.f32 %v347, 0.008264462
    %v350 = vsub.f32 %v271, %v348
    %v351 = vsub.f32 %v274, %v349
    %v352 = vmax.f32 %v350, 0.0001
    %v353 = vmax.f32 %v351, 0.0001
    %v354 = vmul.f32 %v344, %v352
    %v355 = vmul.f32 %v345, %v353
    %v356 = vrsqrt.pop %v354
    %v357 = vmul.f32 %v356, %v354
    %v358 = vmul.f32 %v357, %v356
    %v359 = vmul.f32 0.5, %v358
    %v360 = vsub.f32 1.5, %v359
    %v361 = vmul.f32 %v356, %v360
    %vm362 = vweird.f32 %v354
    %vm363 = vweird.f32 %v356
    %vm364 = vmor %vm362, %vm363
    %v365 = vsel %vm364, %v356, %v361
    %v366 = vrsqrt.pop %v355
    %v367 = vmul.f32 %v366, %v355
    %v368 = vmul.f32 %v367, %v366
    %v369 = vmul.f32 0.5, %v368
    %v370 = vsub.f32 1.5, %v369
    %v371 = vmul.f32 %v366, %v370
    %vm372 = vweird.f32 %v355
    %vm373 = vweird.f32 %v366
    %vm374 = vmor %vm372, %vm373
    %v375 = vsel %vm374, %v366, %v371
    %v376 = vmul.f32 %v336, %v365
    %v377 = vmul.f32 %v337, %v375
    %v378 = vsel %vm57, %v376, 0.0
    %v379 = vsel %vm57, %v377, 0.0
    %v380 = vadd.f32 %v378, %v379
    %v381 = vrot.slane %v380, 4
    %v382 = vadd.f32 %v380, %v381
    %v383 = vrot.slane %v382, 2
    %v384 = vadd.f32 %v382, %v383
    %v385 = vrot.slane %v384, 1
    %v386 = vadd.f32 %v384, %v385
    %v387 = vadd.f32 %v386, 0.0
    %s388 = scalar_lea.vmem [#allocation2], 16
    %v389 = vld [vmem:[%s388] sm:$0xff]
    %v390 = vld [vmem:[%s388 + $0x8] sm:$0xff]
    %s391 = scalar_lea.vmem [#allocation4], 16
    %v392 = vld [vmem:[%s391] sm:$0xff]
    %v393 = vld [vmem:[%s391 + $0x8] sm:$0xff]
    %394 = vmatpush.msra.mxu0 0.0
    %395 = vmatpush.msra.mxu0 0.0
    %396 = vmatpush.msra.mxu0 0.0
    %397 = vmatpush.msra.mxu0 0.0
    %398 = vmatpush.msra.mxu0 0.0
    %399 = vmatpush.msra.mxu0 0.0
    %400 = vmatpush.msra.mxu0 0.0
    %401 = vmatpush.msra.mxu0 0.0
    %402 = vmatpush.msra.mxu0 0.0
    %403 = vmatpush.msra.mxu0 0.0
    %404 = vmatpush.msra.mxu0 0.0
    %405 = vmatpush.msra.mxu0 0.0
    %406 = vmatpush.msra.mxu0 0.0
    %407 = vmatpush.msra.mxu0 0.0
    %408 = vmatpush.msra.mxu0 %v390
    %409 = vmatpush.msra.mxu0 %v389
    %410 = vmatmul.f32.gmra.mxu0 %v59
    %v411 = vpop.f32.mrf.mxu0
    %v412 = vadd.f32 0.0, %v411
    %413 = vmatmul.f32.gmra.mxu0 %v62
    %v414 = vpop.f32.mrf.mxu0
    %v415 = vadd.f32 0.0, %v414
    %416 = vdwg.mxu0
    %v418 = vsel %vm57, %v412, 0
    %v421 = vsel %vm57, %v415, 0
    %423 = vmatpush.msra.mxu0 0.0
    %424 = vmatpush.msra.mxu0 0.0
    %425 = vmatpush.msra.mxu0 0.0
    %426 = vmatpush.msra.mxu0 0.0
    %427 = vmatpush.msra.mxu0 0.0
    %428 = vmatpush.msra.mxu0 0.0
    %429 = vmatpush.msra.mxu0 0.0
    %430 = vmatpush.msra.mxu0 0.0
    %431 = vmatpush.msra.mxu0 0.0
    %432 = vmatpush.msra.mxu0 0.0
    %433 = vmatpush.msra.mxu0 0.0
    %434 = vmatpush.msra.mxu0 0.0
    %435 = vmatpush.msra.mxu0 0.0
    %436 = vmatpush.msra.mxu0 0.0
    %437 = vmatpush.msra.mxu0 %v52
    %438 = vmatpush.msra.mxu0 %v51
    %439 = vmatmul.f32.gmra.mxu0 %v418
    %v440 = vpop.f32.mrf.mxu0
    %v441 = vadd.f32 0.0, %v440
    %442 = vmatmul.f32.gmra.mxu0 %v421
    %v443 = vpop.f32.mrf.mxu0
    %v444 = vadd.f32 0.0, %v443
    %445 = vdwg.mxu0
    %446 = vmatpush.msra.mxu0 0.0
    %447 = vmatpush.msra.mxu0 0.0
    %448 = vmatpush.msra.mxu0 0.0
    %449 = vmatpush.msra.mxu0 0.0
    %450 = vmatpush.msra.mxu0 0.0
    %451 = vmatpush.msra.mxu0 0.0
    %452 = vmatpush.msra.mxu0 0.0
    %453 = vmatpush.msra.mxu0 0.0
    %454 = vmatpush.msra.mxu0 0.0
    %455 = vmatpush.msra.mxu0 0.0
    %456 = vmatpush.msra.mxu0 0.0
    %457 = vmatpush.msra.mxu0 0.0
    %458 = vmatpush.msra.mxu0 0.0
    %459 = vmatpush.msra.mxu0 0.0
    %460 = vmatpush.msra.mxu0 %v393
    %461 = vmatpush.msra.mxu0 %v392
    %462 = vmatmul.f32.gmra.mxu0 %v59
    %v463 = vpop.f32.mrf.mxu0
    %v464 = vadd.f32 0.0, %v463
    %465 = vmatmul.f32.gmra.mxu0 %v62
    %v466 = vpop.f32.mrf.mxu0
    %v467 = vadd.f32 0.0, %v466
    %468 = vdwg.mxu0
    %v470 = vsel %vm57, %v464, 0
    %v473 = vsel %vm57, %v467, 0
    %475 = vmatpush.msra.mxu0 0.0
    %476 = vmatpush.msra.mxu0 0.0
    %477 = vmatpush.msra.mxu0 0.0
    %478 = vmatpush.msra.mxu0 0.0
    %479 = vmatpush.msra.mxu0 0.0
    %480 = vmatpush.msra.mxu0 0.0
    %481 = vmatpush.msra.mxu0 0.0
    %482 = vmatpush.msra.mxu0 0.0
    %483 = vmatpush.msra.mxu0 0.0
    %484 = vmatpush.msra.mxu0 0.0
    %485 = vmatpush.msra.mxu0 0.0
    %486 = vmatpush.msra.mxu0 0.0
    %487 = vmatpush.msra.mxu0 0.0
    %488 = vmatpush.msra.mxu0 0.0
    %489 = vmatpush.msra.mxu0 %v52
    %490 = vmatpush.msra.mxu0 %v51
    %491 = vmatmul.f32.gmra.mxu0 %v470
    %v492 = vpop.f32.mrf.mxu0
    %v493 = vadd.f32 0.0, %v492
    %494 = vmatmul.f32.gmra.mxu0 %v473
    %v495 = vpop.f32.mrf.mxu0
    %v496 = vadd.f32 0.0, %v495
    %497 = vdwg.mxu0
    %v498 = vmul.f32 %v389, %v389
    %v499 = vmul.f32 %v390, %v390
    %500 = vmatpush.msra.mxu0 0.0
    %501 = vmatpush.msra.mxu0 0.0
    %502 = vmatpush.msra.mxu0 0.0
    %503 = vmatpush.msra.mxu0 0.0
    %504 = vmatpush.msra.mxu0 0.0
    %505 = vmatpush.msra.mxu0 0.0
    %506 = vmatpush.msra.mxu0 0.0
    %507 = vmatpush.msra.mxu0 0.0
    %508 = vmatpush.msra.mxu0 0.0
    %509 = vmatpush.msra.mxu0 0.0
    %510 = vmatpush.msra.mxu0 0.0
    %511 = vmatpush.msra.mxu0 0.0
    %512 = vmatpush.msra.mxu0 0.0
    %513 = vmatpush.msra.mxu0 0.0
    %514 = vmatpush.msra.mxu0 %v499
    %515 = vmatpush.msra.mxu0 %v498
    %516 = vmatmul.f32.gmra.mxu0 %v59
    %v517 = vpop.f32.mrf.mxu0
    %v518 = vadd.f32 0.0, %v517
    %519 = vmatmul.f32.gmra.mxu0 %v62
    %v520 = vpop.f32.mrf.mxu0
    %v521 = vadd.f32 0.0, %v520
    %522 = vdwg.mxu0
    %v524 = vsel %vm57, %v518, 0
    %v527 = vsel %vm57, %v521, 0
    %529 = vmatpush.msra.mxu0 0.0
    %530 = vmatpush.msra.mxu0 0.0
    %531 = vmatpush.msra.mxu0 0.0
    %532 = vmatpush.msra.mxu0 0.0
    %533 = vmatpush.msra.mxu0 0.0
    %534 = vmatpush.msra.mxu0 0.0
    %535 = vmatpush.msra.mxu0 0.0
    %536 = vmatpush.msra.mxu0 0.0
    %537 = vmatpush.msra.mxu0 0.0
    %538 = vmatpush.msra.mxu0 0.0
    %539 = vmatpush.msra.mxu0 0.0
    %540 = vmatpush.msra.mxu0 0.0
    %541 = vmatpush.msra.mxu0 0.0
    %542 = vmatpush.msra.mxu0 0.0
    %543 = vmatpush.msra.mxu0 %v52
    %544 = vmatpush.msra.mxu0 %v51
    %545 = vmatmul.f32.gmra.mxu0 %v524
    %v546 = vpop.f32.mrf.mxu0
    %v547 = vadd.f32 0.0, %v546
    %548 = vmatmul.f32.gmra.mxu0 %v527
    %v549 = vpop.f32.mrf.mxu0
    %v550 = vadd.f32 0.0, %v549
    %551 = vdwg.mxu0
    %v552 = vmul.f32 %v392, %v392
    %v553 = vmul.f32 %v393, %v393
    %554 = vmatpush.msra.mxu0 0.0
    %555 = vmatpush.msra.mxu0 0.0
    %556 = vmatpush.msra.mxu0 0.0
    %557 = vmatpush.msra.mxu0 0.0
    %558 = vmatpush.msra.mxu0 0.0
    %559 = vmatpush.msra.mxu0 0.0
    %560 = vmatpush.msra.mxu0 0.0
    %561 = vmatpush.msra.mxu0 0.0
    %562 = vmatpush.msra.mxu0 0.0
    %563 = vmatpush.msra.mxu0 0.0
    %564 = vmatpush.msra.mxu0 0.0
    %565 = vmatpush.msra.mxu0 0.0
    %566 = vmatpush.msra.mxu0 0.0
    %567 = vmatpush.msra.mxu0 0.0
    %568 = vmatpush.msra.mxu0 %v553
    %569 = vmatpush.msra.mxu0 %v552
    %570 = vmatmul.f32.gmra.mxu0 %v59
    %v571 = vpop.f32.mrf.mxu0
    %v572 = vadd.f32 0.0, %v571
    %573 = vmatmul.f32.gmra.mxu0 %v62
    %v574 = vpop.f32.mrf.mxu0
    %v575 = vadd.f32 0.0, %v574
    %576 = vdwg.mxu0
    %v578 = vsel %vm57, %v572, 0
    %v581 = vsel %vm57, %v575, 0
    %583 = vmatpush.msra.mxu0 0.0
    %584 = vmatpush.msra.mxu0 0.0
    %585 = vmatpush.msra.mxu0 0.0
    %586 = vmatpush.msra.mxu0 0.0
    %587 = vmatpush.msra.mxu0 0.0
    %588 = vmatpush.msra.mxu0 0.0
    %589 = vmatpush.msra.mxu0 0.0
    %590 = vmatpush.msra.mxu0 0.0
    %591 = vmatpush.msra.mxu0 0.0
    %592 = vmatpush.msra.mxu0 0.0
    %593 = vmatpush.msra.mxu0 0.0
    %594 = vmatpush.msra.mxu0 0.0
    %595 = vmatpush.msra.mxu0 0.0
    %596 = vmatpush.msra.mxu0 0.0
    %597 = vmatpush.msra.mxu0 %v52
    %598 = vmatpush.msra.mxu0 %v51
    %599 = vmatmul.f32.gmra.mxu0 %v578
    %v600 = vpop.f32.mrf.mxu0
    %v601 = vadd.f32 0.0, %v600
    %602 = vmatmul.f32.gmra.mxu0 %v581
    %v603 = vpop.f32.mrf.mxu0
    %v604 = vadd.f32 0.0, %v603
    %605 = vdwg.mxu0
    %v606 = vmul.f32 %v389, %v392
    %v607 = vmul.f32 %v390, %v393
    %608 = vmatpush.msra.mxu0 0.0
    %609 = vmatpush.msra.mxu0 0.0
    %610 = vmatpush.msra.mxu0 0.0
    %611 = vmatpush.msra.mxu0 0.0
    %612 = vmatpush.msra.mxu0 0.0
    %613 = vmatpush.msra.mxu0 0.0
    %614 = vmatpush.msra.mxu0 0.0
    %615 = vmatpush.msra.mxu0 0.0
    %616 = vmatpush.msra.mxu0 0.0
    %617 = vmatpush.msra.mxu0 0.0
    %618 = vmatpush.msra.mxu0 0.0
    %619 = vmatpush.msra.mxu0 0.0
    %620 = vmatpush.msra.mxu0 0.0
    %621 = vmatpush.msra.mxu0 0.0
    %622 = vmatpush.msra.mxu0 %v607
    %623 = vmatpush.msra.mxu0 %v606
    %624 = vmatmul.f32.gmra.mxu0 %v59
    %v625 = vpop.f32.mrf.mxu0
    %v626 = vadd.f32 0.0, %v625
    %627 = vmatmul.f32.gmra.mxu0 %v62
    %v628 = vpop.f32.mrf.mxu0
    %v629 = vadd.f32 0.0, %v628
    %630 = vdwg.mxu0
    %v632 = vsel %vm57, %v626, 0
    %v635 = vsel %vm57, %v629, 0
    %637 = vmatpush.msra.mxu0 0.0
    %638 = vmatpush.msra.mxu0 0.0
    %639 = vmatpush.msra.mxu0 0.0
    %640 = vmatpush.msra.mxu0 0.0
    %641 = vmatpush.msra.mxu0 0.0
    %642 = vmatpush.msra.mxu0 0.0
    %643 = vmatpush.msra.mxu0 0.0
    %644 = vmatpush.msra.mxu0 0.0
    %645 = vmatpush.msra.mxu0 0.0
    %646 = vmatpush.msra.mxu0 0.0
    %647 = vmatpush.msra.mxu0 0.0
    %648 = vmatpush.msra.mxu0 0.0
    %649 = vmatpush.msra.mxu0 0.0
    %650 = vmatpush.msra.mxu0 0.0
    %651 = vmatpush.msra.mxu0 %v52
    %652 = vmatpush.msra.mxu0 %v51
    %653 = vmatmul.f32.gmra.mxu0 %v632
    %v654 = vpop.f32.mrf.mxu0
    %v655 = vadd.f32 0.0, %v654
    %656 = vmatmul.f32.gmra.mxu0 %v635
    %v657 = vpop.f32.mrf.mxu0
    %v658 = vadd.f32 0.0, %v657
    %659 = vdwg.mxu0
    %v660 = vmul.f32 %v441, %v493
    %v661 = vmul.f32 %v444, %v496
    %v662 = vmul.f32 %v660, 0.008264462
    %v663 = vmul.f32 %v661, 0.008264462
    %v664 = vsub.f32 %v655, %v662
    %v665 = vsub.f32 %v658, %v663
    %v666 = vmax.f32 %v664, 0.0001
    %v667 = vmax.f32 %v665, 0.0001
    %v668 = vmul.f32 %v441, %v441
    %v669 = vmul.f32 %v444, %v444
    %v670 = vmul.f32 %v668, 0.008264462
    %v671 = vmul.f32 %v669, 0.008264462
    %v672 = vsub.f32 %v547, %v670
    %v673 = vsub.f32 %v550, %v671
    %v674 = vmax.f32 %v672, 0.0001
    %v675 = vmax.f32 %v673, 0.0001
    %v676 = vmul.f32 %v493, %v493
    %v677 = vmul.f32 %v496, %v496
    %v678 = vmul.f32 %v676, 0.008264462
    %v679 = vmul.f32 %v677, 0.008264462
    %v680 = vsub.f32 %v601, %v678
    %v681 = vsub.f32 %v604, %v679
    %v682 = vmax.f32 %v680, 0.0001
    %v683 = vmax.f32 %v681, 0.0001
    %v684 = vmul.f32 %v674, %v682
    %v685 = vmul.f32 %v675, %v683
    %v686 = vrsqrt.pop %v684
    %v687 = vmul.f32 %v686, %v684
    %v688 = vmul.f32 %v687, %v686
    %v689 = vmul.f32 0.5, %v688
    %v690 = vsub.f32 1.5, %v689
    %v691 = vmul.f32 %v686, %v690
    %vm692 = vweird.f32 %v684
    %vm693 = vweird.f32 %v686
    %vm694 = vmor %vm692, %vm693
    %v695 = vsel %vm694, %v686, %v691
    %v696 = vrsqrt.pop %v685
    %v697 = vmul.f32 %v696, %v685
    %v698 = vmul.f32 %v697, %v696
    %v699 = vmul.f32 0.5, %v698
    %v700 = vsub.f32 1.5, %v699
    %v701 = vmul.f32 %v696, %v700
    %vm702 = vweird.f32 %v685
    %vm703 = vweird.f32 %v696
    %vm704 = vmor %vm702, %vm703
    %v705 = vsel %vm704, %v696, %v701
    %v706 = vmul.f32 %v666, %v695
    %v707 = vmul.f32 %v667, %v705
    %v708 = vsel %vm57, %v706, 0.0
    %v709 = vsel %vm57, %v707, 0.0
    %v710 = vadd.f32 %v708, %v709
    %v711 = vrot.slane %v710, 4
    %v712 = vadd.f32 %v710, %v711
    %v713 = vrot.slane %v712, 2
    %v714 = vadd.f32 %v712, %v713
    %v715 = vrot.slane %v714, 1
    %v716 = vadd.f32 %v714, %v715
    %v717 = vadd.f32 %v387, %v716
    %vm718 = vcmask 122880
    %719 = vst.msk [vmem:[%s4] sm:$0x1] %vm718, %v717
    // Predicated region
    $region26: #{ncc_pallas.1} parent=1 // pred_check
      _
    $region27: #{ncc_pallas.1} parent=1 // pred_check_branch
      %721 = sbr.rel (0) target = $region29
    $region28: #{ncc_pallas.1} parent=1 // pred_region
      _
    $region29: #{ncc_pallas.1} parent=1 // pred_fallthru
      _
    // Predicated region
    $region30: #{ncc_pallas.1} parent=1 // pred_check
      _
    $region31: #{ncc_pallas.1} parent=1 // pred_check_branch
      %723 = sbr.rel (0) target = $region33
    $region32: #{ncc_pallas.1} parent=1 // pred_region
      _
    $region33: #{ncc_pallas.1} parent=1 // pred_fallthru
      _
    %724 = vsyncpa [#allocation3], 1
    %725 = vsyncpa [#allocation5], 1

</llo_original>
